<compile_context>
chip_gen: v7x
topology: tpu7x:2x2x1
jax: 0.10.0
libtpu: 0.0.40
codegen_flags: <defaults>
</compile_context>

<pallas_src>
import functools
import math

import jax
import jax.numpy as jnp
from jax.experimental import pallas as pl
from jax.experimental.pallas import tpu as pltpu


def _time_encoder_kernel(t_ref, qT_ref, m_ref,
                         wsel_ref, bsel_ref, wwT_ref, bw_ref,
                         o_ref, *, inv_sqrt_d1):
    # Per-batch views (leading block dim of size 1).
    t = t_ref[0]           # (1, S)   time deltas, lane-dense
    qT = qT_ref[0]         # (D1, S)  query, features on sublanes
    m = m_ref[0]           # (1, S)   int32 mask (nonzero = masked)

    # selection_layer: Linear(1 -> D0).  K=1 matmul == outer product, so do it
    # on the VPU as a broadcast multiply instead of burning an MXU pass.
    #   x[d, s] = W_sel[d, 0] * t[s] + b_sel[d]
    x = wsel_ref[...] * t + bsel_ref[...]          # (D0, 1)*(1, S) -> (D0, S)
    f = 1.0 - jnp.tanh(x * x)                      # (D0, S), EUP tanh

    # weight_layer in transposed form: g^T = relu(W_w @ f^T + b_w).
    # PyTorch stores weight_layer.weight as (D1, D0), which is exactly the
    # matrix we need here — no transpose anywhere.
    g = jnp.dot(wwT_ref[...], f, preferred_element_type=jnp.float32)
    g = jnp.maximum(g + bw_ref[...], 0.0)          # (D1, S)

    # score[s] = sum_d g[d, s] * q[d, s] / sqrt(D1)  -> (1, S), lane-dense.
    score = jnp.sum(g * qT, axis=0, keepdims=True) * inv_sqrt_d1

    # masked_fill(mask, -inf)
    score = jnp.where(m != 0, -jnp.inf, score)

    # softmax over the sequence (lane) axis; reciprocal goes to the EUP slot.
    mx = jnp.max(score, axis=-1, keepdims=True)
    e = jnp.exp(score - mx)
    denom = jnp.sum(e, axis=-1, keepdims=True)
    o_ref[0] = e * pl.reciprocal(denom, approx=True)


def time_encoder_forward(seq_time_step, final_queries, mask,
                         w_sel, b_sel, w_w, b_w):
    """TimeEncoder forward.

    seq_time_step: (B, S, 1) f32
    final_queries: (B, S, D1) f32
    mask:          (B, S, 1) bool/int (nonzero = masked)
    w_sel: (D0, 1)  selection_layer.weight (PyTorch (out, in) storage)
    b_sel: (D0,)    selection_layer.bias
    w_w:   (D1, D0) weight_layer.weight
    b_w:   (D1,)    weight_layer.bias
    returns (B, S, 1) f32 softmax attention weights.
    """
    B, S, _ = seq_time_step.shape
    D0 = w_sel.shape[0]
    D1 = w_w.shape[0]

    # --- host-side layout plumbing (cheap; mostly metadata-only reshapes) ---
    # time & mask: (B, S, 1) -> (B, 1, S)  (same flat order, pure reshape)
    t = seq_time_step.reshape(B, 1, S)
    m = mask.reshape(B, 1, S).astype(jnp.int32)
    # queries: (B, S, D1) -> (B, D1, S) so the feature reduction in-kernel is a
    # sublane reduce and the score/output come out lane-dense.
    qT = jnp.transpose(final_queries, (0, 2, 1))
    # parameters as column vectors / native matrices.
    wsel_col = w_sel.reshape(D0, 1)
    bsel_col = b_sel.reshape(D0, 1)
    bw_col = b_w.reshape(D1, 1)

    kernel = functools.partial(_time_encoder_kernel,
                               inv_sqrt_d1=1.0 / math.sqrt(D1))

    grid_spec = pltpu.PrefetchScalarGridSpec(
        num_scalar_prefetch=0,
        grid=(B,),
        in_specs=[
            pl.BlockSpec((1, 1, S),  lambda b: (b, 0, 0)),   # time (lane-dense)
            pl.BlockSpec((1, D1, S), lambda b: (b, 0, 0)),   # q^T
            pl.BlockSpec((1, 1, S),  lambda b: (b, 0, 0)),   # mask
            # Parameter blocks have constant index maps, so they are only
            # DMA'd once and reused across grid steps.
            pl.BlockSpec((D0, 1),    lambda b: (0, 0)),      # W_sel column
            pl.BlockSpec((D0, 1),    lambda b: (0, 0)),      # b_sel column
            pl.BlockSpec((D1, D0),   lambda b: (0, 0)),      # W_w (native storage)
            pl.BlockSpec((D1, 1),    lambda b: (0, 0)),      # b_w column
        ],
        out_specs=pl.BlockSpec((1, 1, S), lambda b: (b, 0, 0)),
    )

    out = pl.pallas_call(
        kernel,
        out_shape=jax.ShapeDtypeStruct((B, 1, S), jnp.float32),
        grid_spec=grid_spec,
        compiler_params=pltpu.CompilerParams(
            dimension_semantics=("parallel",)),   # shards across v7x's 2 TCs
    )(t, qT, m, wsel_col, bsel_col, w_w, bw_col)

    # Metadata-only reshape back to the module's (B, S, 1) output shape.
    return out.reshape(B, S, 1)


def time_encoder_reference(seq_time_step, final_queries, mask_bool,
                           w_sel, b_sel, w_w, b_w):
    """Pure-JAX reference mirroring the PyTorch forward exactly."""
    D1 = w_w.shape[0]
    x = seq_time_step @ w_sel.T + b_sel               # (B,S,1)@(1,D0) -> (B,S,D0)
    f = 1.0 - jnp.tanh(jnp.square(x))
    g = jax.nn.relu(f @ w_w.T + b_w)                  # (B,S,D1)
    s = jnp.sum(g * final_queries, axis=2, keepdims=True) / math.sqrt(D1)
    s = jnp.where(mask_bool, -jnp.inf, s)
    return jax.nn.softmax(s, axis=1)


if __name__ == "__main__":
    # hita_time_selection_layer_global = [D0, D1]
    D0, D1 = 64, 64
    B, S = 2, 8

    key = jax.random.PRNGKey(0)
    k1, k2, k3, k4, k5, k6 = jax.random.split(key, 6)

    # Deterministic synthetic parameters in PyTorch-native shapes:
    #   Linear(in, out).weight is (out, in), bias is (out,).
    w_sel = jax.random.uniform(k1, (D0, 1), jnp.float32, -1.0, 1.0)
    b_sel = jax.random.uniform(k2, (D0,), jnp.float32, -1.0, 1.0)
    w_w   = jax.random.uniform(k3, (D1, D0), jnp.float32,
                               -1.0 / math.sqrt(D0), 1.0 / math.sqrt(D0))
    b_w   = jax.random.uniform(k4, (D1,), jnp.float32,
                               -1.0 / math.sqrt(D0), 1.0 / math.sqrt(D0))

    # Inputs
    seq_time_step = jax.random.uniform(k5, (B, S, 1), jnp.float32, 0.0, 10.0)
    final_queries = jax.random.normal(k6, (B, S, D1), jnp.float32)

    # Mask out the last two sequence positions of every batch (padding).
    pos = jnp.arange(S)[None, :, None]                          # (1,S,1)
    mask_bool = jnp.broadcast_to(pos >= (S - 2), (B, S, 1))

    out = time_encoder_forward(seq_time_step, final_queries, mask_bool,
                               w_sel, b_sel, w_w, b_w)
    out = jax.block_until_ready(out)

    ref = time_encoder_reference(seq_time_step, final_queries, mask_bool,
                                 w_sel, b_sel, w_w, b_w)
    assert out.shape == (B, S, 1)
    # Tolerance loosened slightly (1e-3) because the softmax denominator uses
    # the EUP approximate reciprocal; softmax outputs are probabilities so this
    # is well within meaningful accuracy.
    assert jnp.allclose(out, ref, atol=1e-3, rtol=1e-3), "mismatch vs reference"

    print("KERNEL_OK")
</pallas_src>

<mosaic_0001>
module attributes {stable_mosaic.version = 11 : i64} {
  func.func @_time_encoder_kernel(%arg0: i32, %arg1: memref<1x1x8xf32, #tpu.memory_space<vmem>>, %arg2: memref<1x64x8xf32, #tpu.memory_space<vmem>>, %arg3: memref<1x1x8xi32, #tpu.memory_space<vmem>>, %arg4: memref<64x1xf32, #tpu.memory_space<vmem>>, %arg5: memref<64x1xf32, #tpu.memory_space<vmem>>, %arg6: memref<64x64xf32, #tpu.memory_space<vmem>>, %arg7: memref<64x1xf32, #tpu.memory_space<vmem>>, %arg8: memref<1x1x8xf32, #tpu.memory_space<vmem>>) attributes {dimension_semantics = [#tpu.dimension_semantics<parallel>], iteration_bounds = array<i64: 2>, scalar_prefetch = 0 : i64, scratch_operands = 0 : i64, tpu.core_type = #tpu.core_type<tc>, window_params = [{transform_indices = @transform_0, window_bounds = array<i64: 1, 1, 8>}, {transform_indices = @transform_1, window_bounds = array<i64: 1, 64, 8>}, {transform_indices = @transform_2, window_bounds = array<i64: 1, 1, 8>}, {pipeline_mode = #tpu.pipeline_mode<synchronous>, transform_indices = @transform_3, window_bounds = array<i64: 64, 1>}, {pipeline_mode = #tpu.pipeline_mode<synchronous>, transform_indices = @transform_4, window_bounds = array<i64: 64, 1>}, {pipeline_mode = #tpu.pipeline_mode<synchronous>, transform_indices = @transform_5, window_bounds = array<i64: 64, 64>}, {pipeline_mode = #tpu.pipeline_mode<synchronous>, transform_indices = @transform_6, window_bounds = array<i64: 64, 1>}, {transform_indices = @transform_7, window_bounds = array<i64: 1, 1, 8>}]} {
    %c0 = arith.constant 0 : index
    %c0_0 = arith.constant 0 : index
    %c0_1 = arith.constant 0 : index
    %0 = vector.load %arg1[%c0, %c0_0, %c0_1] : memref<1x1x8xf32, #tpu.memory_space<vmem>>, vector<1x1x8xf32>
    %1 = vector.shape_cast %0 : vector<1x1x8xf32> to vector<1x8xf32>
    %c0_2 = arith.constant 0 : index
    %c0_3 = arith.constant 0 : index
    %c0_4 = arith.constant 0 : index
    %2 = vector.load %arg2[%c0_2, %c0_3, %c0_4] : memref<1x64x8xf32, #tpu.memory_space<vmem>>, vector<1x64x8xf32>
    %3 = vector.shape_cast %2 : vector<1x64x8xf32> to vector<64x8xf32>
    %c0_5 = arith.constant 0 : index
    %c0_6 = arith.constant 0 : index
    %c0_7 = arith.constant 0 : index
    %4 = vector.load %arg3[%c0_5, %c0_6, %c0_7] : memref<1x1x8xi32, #tpu.memory_space<vmem>>, vector<1x1x8xi32>
    %5 = vector.shape_cast %4 : vector<1x1x8xi32> to vector<1x8xi32>
    %c0_8 = arith.constant 0 : index
    %c0_9 = arith.constant 0 : index
    %6 = vector.load %arg4[%c0_8, %c0_9] : memref<64x1xf32, #tpu.memory_space<vmem>>, vector<64x1xf32>
    %7 = vector.broadcast %6 : vector<64x1xf32> to vector<64x8xf32>
    %8 = vector.broadcast %1 : vector<1x8xf32> to vector<64x8xf32>
    %9 = arith.mulf %7, %8 : vector<64x8xf32>
    %c0_10 = arith.constant 0 : index
    %c0_11 = arith.constant 0 : index
    %10 = vector.load %arg5[%c0_10, %c0_11] : memref<64x1xf32, #tpu.memory_space<vmem>>, vector<64x1xf32>
    %11 = vector.broadcast %10 : vector<64x1xf32> to vector<64x8xf32>
    %12 = arith.addf %9, %11 : vector<64x8xf32>
    %13 = arith.mulf %12, %12 : vector<64x8xf32>
    %14 = math.tanh %13 : vector<64x8xf32>
    %cst = arith.constant 1.000000e+00 : f32
    %15 = vector.broadcast %cst : f32 to vector<64x8xf32>
    %16 = arith.subf %15, %14 : vector<64x8xf32>
    %c0_12 = arith.constant 0 : index
    %c0_13 = arith.constant 0 : index
    %17 = vector.load %arg6[%c0_12, %c0_13] : memref<64x64xf32, #tpu.memory_space<vmem>>, vector<64x64xf32>
    %cst_14 = arith.constant dense<0.000000e+00> : vector<64x8xf32>
    %18 = tpu.matmul %17, %16, %cst_14 {dimension_numbers = #tpu.dot_dimension_numbers<[1], [0], [0], [1], [0, 0, 1, 1], [], []>} : vector<64x64xf32>, vector<64x8xf32>, vector<64x8xf32> -> vector<64x8xf32>
    %c0_15 = arith.constant 0 : index
    %c0_16 = arith.constant 0 : index
    %19 = vector.load %arg7[%c0_15, %c0_16] : memref<64x1xf32, #tpu.memory_space<vmem>>, vector<64x1xf32>
    %20 = vector.broadcast %19 : vector<64x1xf32> to vector<64x8xf32>
    %21 = arith.addf %18, %20 : vector<64x8xf32>
    %cst_17 = arith.constant 0.000000e+00 : f32
    %22 = vector.broadcast %cst_17 : f32 to vector<64x8xf32>
    %23 = arith.maximumf %21, %22 : vector<64x8xf32>
    %24 = arith.mulf %23, %3 : vector<64x8xf32>
    %cst_18 = arith.constant dense<0.000000e+00> : vector<8xf32>
    %25 = vector.multi_reduction <add>, %24, %cst_18 [0] : vector<64x8xf32> to vector<8xf32>
    %26 = vector.shape_cast %25 : vector<8xf32> to vector<1x8xf32>
    %cst_19 = arith.constant 1.250000e-01 : f32
    %27 = vector.broadcast %cst_19 : f32 to vector<1x8xf32>
    %28 = arith.mulf %26, %27 : vector<1x8xf32>
    %c0_i32 = arith.constant 0 : i32
    %29 = vector.broadcast %c0_i32 : i32 to vector<1x8xi32>
    %30 = arith.cmpi ne, %5, %29 : vector<1x8xi32>
    %cst_20 = arith.constant 0xFF800000 : f32
    %31 = vector.broadcast %cst_20 : f32 to vector<1x8xf32>
    %32 = arith.select %30, %31, %28 : vector<1x8xi1>, vector<1x8xf32>
    %cst_21 = arith.constant dense<0xFF800000> : vector<1xf32>
    %33 = vector.multi_reduction <maximumf>, %32, %cst_21 [1] : vector<1x8xf32> to vector<1xf32>
    %34 = vector.shape_cast %33 : vector<1xf32> to vector<1x1xf32>
    %35 = vector.broadcast %34 : vector<1x1xf32> to vector<1x8xf32>
    %36 = arith.subf %32, %35 : vector<1x8xf32>
    %37 = math.exp %36 : vector<1x8xf32>
    %cst_22 = arith.constant dense<0.000000e+00> : vector<1xf32>
    %38 = vector.multi_reduction <add>, %37, %cst_22 [1] : vector<1x8xf32> to vector<1xf32>
    %39 = vector.shape_cast %38 : vector<1xf32> to vector<1x1xf32>
    %40 = tpu.reciprocal %39 {approx = true} : vector<1x1xf32> -> vector<1x1xf32>
    %41 = vector.broadcast %40 : vector<1x1xf32> to vector<1x8xf32>
    %42 = arith.mulf %37, %41 : vector<1x8xf32>
    %c0_23 = arith.constant 0 : index
    %c0_24 = arith.constant 0 : index
    %c0_25 = arith.constant 0 : index
    %43 = vector.load %arg8[%c0_23, %c0_24, %c0_25] : memref<1x1x8xf32, #tpu.memory_space<vmem>>, vector<1x1x8xf32>
    %44 = vector.shape_cast %43 : vector<1x1x8xf32> to vector<1x8xf32>
    %45 = vector.shape_cast %42 : vector<1x8xf32> to vector<1x1x8xf32>
    tpu.vector_store %arg8[%c0_23, %c0_24, %c0_25], %45 {strides = array<i32>} : memref<1x1x8xf32, #tpu.memory_space<vmem>>, vector<1x1x8xf32>,
    return
  }
  func.func @transform_0(%arg0: i32) -> (i32, i32, i32) {
    %c0_i32 = arith.constant 0 : i32
    %c0_i32_0 = arith.constant 0 : i32
    %c0_i32_1 = arith.constant 0 : i32
    return %arg0, %c0_i32, %c0_i32_0 : i32, i32, i32
  }
  func.func @transform_1(%arg0: i32) -> (i32, i32, i32) {
    %c0_i32 = arith.constant 0 : i32
    %c0_i32_0 = arith.constant 0 : i32
    %c0_i32_1 = arith.constant 0 : i32
    return %arg0, %c0_i32, %c0_i32_0 : i32, i32, i32
  }
  func.func @transform_2(%arg0: i32) -> (i32, i32, i32) {
    %c0_i32 = arith.constant 0 : i32
    %c0_i32_0 = arith.constant 0 : i32
    %c0_i32_1 = arith.constant 0 : i32
    return %arg0, %c0_i32, %c0_i32_0 : i32, i32, i32
  }
  func.func @transform_3(%arg0: i32) -> (i32, i32) {
    %c0_i32 = arith.constant 0 : i32
    %c0_i32_0 = arith.constant 0 : i32
    %c0_i32_1 = arith.constant 0 : i32
    return %c0_i32, %c0_i32_0 : i32, i32
  }
  func.func @transform_4(%arg0: i32) -> (i32, i32) {
    %c0_i32 = arith.constant 0 : i32
    %c0_i32_0 = arith.constant 0 : i32
    %c0_i32_1 = arith.constant 0 : i32
    return %c0_i32, %c0_i32_0 : i32, i32
  }
  func.func @transform_5(%arg0: i32) -> (i32, i32) {
    %c0_i32 = arith.constant 0 : i32
    %c0_i32_0 = arith.constant 0 : i32
    %c0_i32_1 = arith.constant 0 : i32
    return %c0_i32, %c0_i32_0 : i32, i32
  }
  func.func @transform_6(%arg0: i32) -> (i32, i32) {
    %c0_i32 = arith.constant 0 : i32
    %c0_i32_0 = arith.constant 0 : i32
    %c0_i32_1 = arith.constant 0 : i32
    return %c0_i32, %c0_i32_0 : i32, i32
  }
  func.func @transform_7(%arg0: i32) -> (i32, i32, i32) {
    %c0_i32 = arith.constant 0 : i32
    %c0_i32_0 = arith.constant 0 : i32
    %c0_i32_1 = arith.constant 0 : i32
    return %arg0, %c0_i32, %c0_i32_0 : i32, i32, i32
  }
}

</mosaic_0001>

<llo_original>
// kernel: tpu_custom_call.1
$region0: #{tpu_custom_call.1}
  #allocation0 [shape = 'u32[]', space=smem, size = 0x4, offset = 0x4, fixed_abs, tag = 'smem constant byte address 0x4 - core index']
  #allocation1 [shape = 'u32[144,128]{1,0:T(1,128)}', space=vmem, size = 0x12000, scoped, tag = 'internal scratch']
  %s0 = inlined_call_operand.vmem [shape: f32[2,1,8], index: 0, kind: input, shape index: {}]
  %s1 = inlined_call_operand.vmem [shape: f32[2,64,8], index: 1, kind: input, shape index: {}]
  %s2 = inlined_call_operand.vmem [shape: s32[2,1,8], index: 2, kind: input, shape index: {}]
  %s3 = inlined_call_operand.vmem [shape: f32[64,1], index: 3, kind: input, shape index: {}]
  %s4 = inlined_call_operand.vmem [shape: f32[64,1], index: 4, kind: input, shape index: {}]
  %s5 = inlined_call_operand.vmem [shape: f32[64,64], index: 5, kind: input, shape index: {}]
  %s6 = inlined_call_operand.vmem [shape: f32[64,1], index: 6, kind: input, shape index: {}]
  %s7 = inlined_call_operand.hbm [shape: f32[2,1,8], index: 7, kind: output, shape index: {}]
  %s8 = sld [smem:[#allocation0]]
  $region61: #{tpu_custom_call.1} parent=0
    _
  %s10 = ssub.s32 1, %s8
  %s11 = scalar_select 0, %s10, %s8
  $region1: #{tpu_custom_call.1} parent=0
    #allocation2 [shape = 'u8[1024]{0}', space=vmem, size = 0x400, scoped, tag = 'output window, operand 0']
    #allocation3 [shape = 's32[2]{0}', space=sflag, size = 0x8, scoped, tag = 'scoped memory for tpu_custom_call.1']
    %12 = vsyncpa [#allocation3], 0
    %s13 = scalar_lea.sflag [#allocation3], 1
    %14 = vsyncpa %s13, 0
    loop: start=0, step=1, limit=4
    $region2: #{tpu_custom_call.1} parent=1 // loop_pre_header
      _
    $region3: #{tpu_custom_call.1} parent=1 // loop_header
      %s16 = sphi 0, %s20
      %p17 = scmp.ge.s32.totalorder %s16, 4
      %s26 = sphi 0, %s28
      %s29 = sphi 0, %s26
      %s30 = sphi 0, %s29
      %s46 = sphi 0, %s30
      %s52 = sphi 0, %s54
      %s55 = sphi 0, %s52
      %s56 = sphi 0, %s55
      %s72 = sphi 0, %s56
      %s78 = sphi 0, %s80
      %s81 = sphi 0, %s78
      %s82 = sphi 0, %s81
      %s98 = sphi 0, %s82
      %s102 = sphi 0, %s102
      %s104 = sphi 0, %s102
      %s105 = sphi 0, %s104
      %s119 = sphi 0, %s105
      %s123 = sphi 0, %s123
      %s125 = sphi 0, %s123
      %s126 = sphi 0, %s125
      %s140 = sphi 0, %s126
      %s144 = sphi 0, %s144
      %s146 = sphi 0, %s144
      %s147 = sphi 0, %s146
      %s161 = sphi 0, %s147
      %s165 = sphi 0, %s165
      %s167 = sphi 0, %s165
      %s168 = sphi 0, %s167
      %s182 = sphi 0, %s168
      %s188 = sphi 0, %s190
      %s191 = sphi 0, %s188
      %s192 = sphi 0, %s191
      %s208 = sphi 0, %s192
    $region4: #{tpu_custom_call.1} parent=1 // loop_header_branch
      %19 = sbr.rel (%p17) target = $region8
    $region5: #{tpu_custom_call.1} parent=1 // loop_body
      %s21 = ssub.s32 %s16, 1
      %s22 = ssub.s32 %s16, 2
      %s23 = sadd.s32 %s16, 1
      %s24 = ssub.s32 %s16, %s23
      %p25 = scmp.eq.s32.totalorder %s24, 0
      %s27 = sadd.s32 %s26, 1
      %s28 = scalar_select %p25, %s26, %s27
      %p31 = pneg %p25
      %p32 = scmp.eq.s32.totalorder %s16, 1
      %p33 = por %p31, %p32
      %p34 = scmp.ne.s32.totalorder %s26, %s29
      %p35 = scmp.eq.s32.totalorder %s16, 0
      %p36 = por %p34, %p35
      %p37 = scmp.ne.s32.totalorder %s26, %s29
      %p38 = scmp.eq.s32.totalorder %s21, 1
      %p39 = por %p37, %p38
      %p40 = scmp.ne.s32.totalorder %s29, %s30
      %p41 = scmp.eq.s32.totalorder %s21, 0
      %p42 = por %p40, %p41
      %p43 = scmp.ne.s32.totalorder %s29, %s30
      %p44 = scmp.eq.s32.totalorder %s22, 1
      %p45 = por %p43, %p44
      %p47 = scmp.ne.s32.totalorder %s30, %s46
      %p48 = scmp.eq.s32.totalorder %s22, 0
      %p49 = por %p47, %p48
      %s50 = ssub.s32 %s16, %s23
      %p51 = scmp.eq.s32.totalorder %s50, 0
      %s53 = sadd.s32 %s52, 1
      %s54 = scalar_select %p51, %s52, %s53
      %p57 = pneg %p51
      %p58 = scmp.eq.s32.totalorder %s16, 1
      %p59 = por %p57, %p58
      %p60 = scmp.ne.s32.totalorder %s52, %s55
      %p61 = scmp.eq.s32.totalorder %s16, 0
      %p62 = por %p60, %p61
      %p63 = scmp.ne.s32.totalorder %s52, %s55
      %p64 = scmp.eq.s32.totalorder %s21, 1
      %p65 = por %p63, %p64
      %p66 = scmp.ne.s32.totalorder %s55, %s56
      %p67 = scmp.eq.s32.totalorder %s21, 0
      %p68 = por %p66, %p67
      %p69 = scmp.ne.s32.totalorder %s55, %s56
      %p70 = scmp.eq.s32.totalorder %s22, 1
      %p71 = por %p69, %p70
      %p73 = scmp.ne.s32.totalorder %s56, %s72
      %p74 = scmp.eq.s32.totalorder %s22, 0
      %p75 = por %p73, %p74
      %s76 = ssub.s32 %s16, %s23
      %p77 = scmp.eq.s32.totalorder %s76, 0
      %s79 = sadd.s32 %s78, 1
      %s80 = scalar_select %p77, %s78, %s79
      %p83 = pneg %p77
      %p84 = scmp.eq.s32.totalorder %s16, 1
      %p85 = por %p83, %p84
      %p86 = scmp.ne.s32.totalorder %s78, %s81
      %p87 = scmp.eq.s32.totalorder %s16, 0
      %p88 = por %p86, %p87
      %p89 = scmp.ne.s32.totalorder %s78, %s81
      %p90 = scmp.eq.s32.totalorder %s21, 1
      %p91 = por %p89, %p90
      %p92 = scmp.ne.s32.totalorder %s81, %s82
      %p93 = scmp.eq.s32.totalorder %s21, 0
      %p94 = por %p92, %p93
      %p95 = scmp.ne.s32.totalorder %s81, %s82
      %p96 = scmp.eq.s32.totalorder %s22, 1
      %p97 = por %p95, %p96
      %p99 = scmp.ne.s32.totalorder %s82, %s98
      %p100 = scmp.eq.s32.totalorder %s22, 0
      %p101 = por %p99, %p100
      %s103 = sadd.s32 %s102, 1
      %p106 = scmp.eq.s32.totalorder %s16, 1
      %p107 = scmp.ne.s32.totalorder %s102, %s104
      %p108 = scmp.eq.s32.totalorder %s16, 0
      %p109 = por %p107, %p108
      %p110 = scmp.ne.s32.totalorder %s102, %s104
      %p111 = scmp.eq.s32.totalorder %s21, 1
      %p112 = por %p110, %p111
      %p113 = scmp.ne.s32.totalorder %s104, %s105
      %p114 = scmp.eq.s32.totalorder %s21, 0
      %p115 = por %p113, %p114
      %p116 = scmp.ne.s32.totalorder %s104, %s105
      %p117 = scmp.eq.s32.totalorder %s22, 1
      %p118 = por %p116, %p117
      %p120 = scmp.ne.s32.totalorder %s105, %s119
      %p121 = scmp.eq.s32.totalorder %s22, 0
      %p122 = por %p120, %p121
      %s124 = sadd.s32 %s123, 1
      %p127 = scmp.eq.s32.totalorder %s16, 1
      %p128 = scmp.ne.s32.totalorder %s123, %s125
      %p129 = scmp.eq.s32.totalorder %s16, 0
      %p130 = por %p128, %p129
      %p131 = scmp.ne.s32.totalorder %s123, %s125
      %p132 = scmp.eq.s32.totalorder %s21, 1
      %p133 = por %p131, %p132
      %p134 = scmp.ne.s32.totalorder %s125, %s126
      %p135 = scmp.eq.s32.totalorder %s21, 0
      %p136 = por %p134, %p135
      %p137 = scmp.ne.s32.totalorder %s125, %s126
      %p138 = scmp.eq.s32.totalorder %s22, 1
      %p139 = por %p137, %p138
      %p141 = scmp.ne.s32.totalorder %s126, %s140
      %p142 = scmp.eq.s32.totalorder %s22, 0
      %p143 = por %p141, %p142
      %s145 = sadd.s32 %s144, 1
      %p148 = scmp.eq.s32.totalorder %s16, 1
      %p149 = scmp.ne.s32.totalorder %s144, %s146
      %p150 = scmp.eq.s32.totalorder %s16, 0
      %p151 = por %p149, %p150
      %p152 = scmp.ne.s32.totalorder %s144, %s146
      %p153 = scmp.eq.s32.totalorder %s21, 1
      %p154 = por %p152, %p153
      %p155 = scmp.ne.s32.totalorder %s146, %s147
      %p156 = scmp.eq.s32.totalorder %s21, 0
      %p157 = por %p155, %p156
      %p158 = scmp.ne.s32.totalorder %s146, %s147
      %p159 = scmp.eq.s32.totalorder %s22, 1
      %p160 = por %p158, %p159
      %p162 = scmp.ne.s32.totalorder %s147, %s161
      %p163 = scmp.eq.s32.totalorder %s22, 0
      %p164 = por %p162, %p163
      %s166 = sadd.s32 %s165, 1
      %p169 = scmp.eq.s32.totalorder %s16, 1
      %p170 = scmp.ne.s32.totalorder %s165, %s167
      %p171 = scmp.eq.s32.totalorder %s16, 0
      %p172 = por %p170, %p171
      %p173 = scmp.ne.s32.totalorder %s165, %s167
      %p174 = scmp.eq.s32.totalorder %s21, 1
      %p175 = por %p173, %p174
      %p176 = scmp.ne.s32.totalorder %s167, %s168
      %p177 = scmp.eq.s32.totalorder %s21, 0
      %p178 = por %p176, %p177
      %p179 = scmp.ne.s32.totalorder %s167, %s168
      %p180 = scmp.eq.s32.totalorder %s22, 1
      %p181 = por %p179, %p180
      %p183 = scmp.ne.s32.totalorder %s168, %s182
      %p184 = scmp.eq.s32.totalorder %s22, 0
      %p185 = por %p183, %p184
      %s186 = ssub.s32 %s16, %s23
      %p187 = scmp.eq.s32.totalorder %s186, 0
      %s189 = sadd.s32 %s188, 1
      %s190 = scalar_select %p187, %s188, %s189
      %p193 = pneg %p187
      %p194 = scmp.eq.s32.totalorder %s16, 1
      %p195 = por %p193, %p194
      %p196 = scmp.ne.s32.totalorder %s188, %s191
      %p197 = scmp.eq.s32.totalorder %s16, 0
      %p198 = por %p196, %p197
      %p199 = scmp.ne.s32.totalorder %s188, %s191
      %p200 = scmp.eq.s32.totalorder %s21, 1
      %p201 = por %p199, %p200
      %p202 = scmp.ne.s32.totalorder %s191, %s192
      %p203 = scmp.eq.s32.totalorder %s21, 0
      %p204 = por %p202, %p203
      %p205 = scmp.ne.s32.totalorder %s191, %s192
      %p206 = scmp.eq.s32.totalorder %s22, 1
      %p207 = por %p205, %p206
      %p209 = scmp.ne.s32.totalorder %s192, %s208
      %p210 = scmp.eq.s32.totalorder %s22, 0
      %p211 = por %p209, %p210
      %p212 = scmp.le.s32.totalorder 1, %s16
      %p213 = scmp.lt.s32.totalorder %s16, 3
      %p214 = pnand %p212, %p213
      %p215 = pneg %p214
      // Predicated region
      $region9: #{tpu_custom_call.1} parent=5 // pred_check
        _
      $region10: #{tpu_custom_call.1} parent=5 // pred_check_branch
        %217 = sbr.rel (%p214) target = $region12
      $region11: #{tpu_custom_call.1} parent=5 // pred_region
        %s218 = ssub.s32 %s16, 1
        // Predicated region
        $region13: #{tpu_custom_call.1} parent=11 // pred_check
          %p219 = pneg %p115
        $region14: #{tpu_custom_call.1} parent=11 // pred_check_branch
          %221 = sbr.rel (%p219) target = $region16
        $region15: #{tpu_custom_call.1} parent=11 // pred_region
          _
        $region16: #{tpu_custom_call.1} parent=11 // pred_fallthru
          _
        // Predicated region
        $region17: #{tpu_custom_call.1} parent=11 // pred_check
          %p222 = pneg %p136
        $region18: #{tpu_custom_call.1} parent=11 // pred_check_branch
          %224 = sbr.rel (%p222) target = $region20
        $region19: #{tpu_custom_call.1} parent=11 // pred_region
          _
        $region20: #{tpu_custom_call.1} parent=11 // pred_fallthru
          _
        // Predicated region
        $region21: #{tpu_custom_call.1} parent=11 // pred_check
          %p225 = pneg %p157
        $region22: #{tpu_custom_call.1} parent=11 // pred_check_branch
          %227 = sbr.rel (%p225) target = $region24
        $region23: #{tpu_custom_call.1} parent=11 // pred_region
          _
        $region24: #{tpu_custom_call.1} parent=11 // pred_fallthru
          _
        // Predicated region
        $region25: #{tpu_custom_call.1} parent=11 // pred_check
          %p228 = pneg %p178
        $region26: #{tpu_custom_call.1} parent=11 // pred_check_branch
          %230 = sbr.rel (%p228) target = $region28
        $region27: #{tpu_custom_call.1} parent=11 // pred_region
          _
        $region28: #{tpu_custom_call.1} parent=11 // pred_fallthru
          _
      $region12: #{tpu_custom_call.1} parent=5 // pred_fallthru
        _
      %p231 = scmp.lt.s32.totalorder %s16, 2
      // Predicated region
      $region29: #{tpu_custom_call.1} parent=5 // pred_check
        %p232 = pneg %p231
      $region30: #{tpu_custom_call.1} parent=5 // pred_check_branch
        %234 = sbr.rel (%p232) target = $region32
      $region31: #{tpu_custom_call.1} parent=5 // pred_region
        // Predicated region
        $region33: #{tpu_custom_call.1} parent=31 // pred_check
          %p235 = pneg %p36
        $region34: #{tpu_custom_call.1} parent=31 // pred_check_branch
          %237 = sbr.rel (%p235) target = $region36
        $region35: #{tpu_custom_call.1} parent=31 // pred_region
          %p238 = scmp.lt.s32.totalorder %s16, 1
          %s239 = scalar_select %p238, %s16, 1
          %s240 = scalar_lea.vmem %s0, %s239
        $region36: #{tpu_custom_call.1} parent=31 // pred_fallthru
          _
        // Predicated region
        $region37: #{tpu_custom_call.1} parent=31 // pred_check
          %p241 = pneg %p62
        $region38: #{tpu_custom_call.1} parent=31 // pred_check_branch
          %243 = sbr.rel (%p241) target = $region40
        $region39: #{tpu_custom_call.1} parent=31 // pred_region
          %p244 = scmp.lt.s32.totalorder %s16, 1
          %s245 = scalar_select %p244, %s16, 1
          %s246 = smul.addr %s245, 8
          %s247 = smul.addr %s246, 8
          %s248 = scalar_lea.vmem %s1, %s247
        $region40: #{tpu_custom_call.1} parent=31 // pred_fallthru
          _
        // Predicated region
        $region41: #{tpu_custom_call.1} parent=31 // pred_check
          %p249 = pneg %p88
        $region42: #{tpu_custom_call.1} parent=31 // pred_check_branch
          %251 = sbr.rel (%p249) target = $region44
        $region43: #{tpu_custom_call.1} parent=31 // pred_region
          %p252 = scmp.lt.s32.totalorder %s16, 1
          %s253 = scalar_select %p252, %s16, 1
          %s254 = scalar_lea.vmem %s2, %s253
        $region44: #{tpu_custom_call.1} parent=31 // pred_fallthru
          _
      $region32: #{tpu_custom_call.1} parent=5 // pred_fallthru
        _
      %p255 = scmp.le.s32.totalorder 1, %s16
      %p256 = scmp.lt.s32.totalorder %s16, 3
      %p257 = pnand %p255, %p256
      %p258 = pneg %p257
      // Predicated region
      $region45: #{tpu_custom_call.1} parent=5 // pred_check
        _
      $region46: #{tpu_custom_call.1} parent=5 // pred_check_branch
        %260 = sbr.rel (%p257) target = $region48
      $region47: #{tpu_custom_call.1} parent=5 // pred_region
        %s261 = ssub.s32 %s16, 1
        %p262 = scmp.lt.s32.totalorder %s21, 1
        %s263 = scalar_select %p262, %s21, 1
        %s264 = scalar_lea.vmem %s0, %s263
        %p265 = pneg %p42
        %p266 = pneg %p39
        %p267 = scmp.lt.s32.totalorder %s21, 1
        %s268 = scalar_select %p267, %s21, 1
        %s269 = smul.addr %s268, 8
        %s270 = smul.addr %s269, 8
        %s271 = scalar_lea.vmem %s1, %s270
        %p272 = pneg %p68
        %p273 = pneg %p65
        %p274 = scmp.lt.s32.totalorder %s21, 1
        %s275 = scalar_select %p274, %s21, 1
        %s276 = scalar_lea.vmem %s2, %s275
        %p277 = pneg %p94
        %p278 = pneg %p91
        %p279 = pneg %p115
        %p280 = pneg %p112
        %p281 = pneg %p136
        %p282 = pneg %p133
        %p283 = pneg %p157
        %p284 = pneg %p154
        %p285 = pneg %p178
        %p286 = pneg %p175
        %p287 = pneg %p204
        %p288 = pneg %p201
        %s289 = sand.u32 %s191, 1
        %s290 = scalar_lea.sflag [#allocation3], %s289
        %s291 = sand.u32 %s191, 1
        %s292 = scalar_lea.vmem [#allocation2], %s291
        %p293 = scmp.lt.s32.totalorder %s21, 1
        %s294 = scalar_select %p293, %s21, 1
        %s295 = scalar_lea.vmem %s0, %s294
        %p296 = scmp.lt.s32.totalorder %s21, 1
        %s297 = scalar_select %p296, %s21, 1
        %s298 = smul.addr %s297, 8
        %s299 = smul.addr %s298, 8
        %s300 = scalar_lea.vmem %s1, %s299
        %p301 = scmp.lt.s32.totalorder %s21, 1
        %s302 = scalar_select %p301, %s21, 1
        %s303 = scalar_lea.vmem %s2, %s302
        %v304 = vld [vmem:[%s295] sm:$0x1]
        %v305 = vld [vmem:[%s300] sm:$0xff]
        %v306 = vld [vmem:[%s300 + $0x8] sm:$0xff]
        %v307 = vld [vmem:[%s300 + $0x10] sm:$0xff]
        %v308 = vld [vmem:[%s300 + $0x18] sm:$0xff]
        %v309 = vld [vmem:[%s300 + $0x20] sm:$0xff]
        %v310 = vld [vmem:[%s300 + $0x28] sm:$0xff]
        %v311 = vld [vmem:[%s300 + $0x30] sm:$0xff]
        %v312 = vld [vmem:[%s300 + $0x38] sm:$0xff]
        %v313 = vld [vmem:[%s303] sm:$0x1]
        %v314 = vld [vmem:[%s3] sm:$0xff]
        %v315 = vld [vmem:[%s3 + $0x8] sm:$0xff]
        %v316 = vld [vmem:[%s3 + $0x10] sm:$0xff]
        %v317 = vld [vmem:[%s3 + $0x18] sm:$0xff]
        %v318 = vld [vmem:[%s3 + $0x20] sm:$0xff]
        %v319 = vld [vmem:[%s3 + $0x28] sm:$0xff]
        %v320 = vld [vmem:[%s3 + $0x30] sm:$0xff]
        %v321 = vld [vmem:[%s3 + $0x38] sm:$0xff]
        %323 = vset.pattern.permute.xlu0 0
        %324 = vperm.xlu0 %323, %v314
        %v325 = vpop.permute.xlu0 %324
        %328 = vset.pattern.permute.xlu0 0
        %329 = vperm.xlu0 %328, %v315
        %v330 = vpop.permute.xlu0 %329
        %333 = vset.pattern.permute.xlu0 0
        %334 = vperm.xlu0 %333, %v316
        %v335 = vpop.permute.xlu0 %334
        %338 = vset.pattern.permute.xlu0 0
        %339 = vperm.xlu0 %338, %v317
        %v340 = vpop.permute.xlu0 %339
        %343 = vset.pattern.permute.xlu0 0
        %344 = vperm.xlu0 %343, %v318
        %v345 = vpop.permute.xlu0 %344
        %348 = vset.pattern.permute.xlu0 0
        %349 = vperm.xlu0 %348, %v319
        %v350 = vpop.permute.xlu0 %349
        %353 = vset.pattern.permute.xlu0 0
        %354 = vperm.xlu0 %353, %v320
        %v355 = vpop.permute.xlu0 %354
        %358 = vset.pattern.permute.xlu0 0
        %359 = vperm.xlu0 %358, %v321
        %v360 = vpop.permute.xlu0 %359
        %v363 = vlaneseq
        %v364 = vshrl.u32 %v363, 7
        %v365 = vsub.s32 0, %v364
        %v366 = vrot.slane %v304, %v365
        %v368 = vmul.f32 %v325, %v366
        %v369 = vmul.f32 %v330, %v366
        %v370 = vmul.f32 %v335, %v366
        %v371 = vmul.f32 %v340, %v366
        %v372 = vmul.f32 %v345, %v366
        %v373 = vmul.f32 %v350, %v366
        %v374 = vmul.f32 %v355, %v366
        %v375 = vmul.f32 %v360, %v366
        %v376 = vld [vmem:[%s4] sm:$0xff]
        %v377 = vld [vmem:[%s4 + $0x8] sm:$0xff]
        %v378 = vld [vmem:[%s4 + $0x10] sm:$0xff]
        %v379 = vld [vmem:[%s4 + $0x18] sm:$0xff]
        %v380 = vld [vmem:[%s4 + $0x20] sm:$0xff]
        %v381 = vld [vmem:[%s4 + $0x28] sm:$0xff]
        %v382 = vld [vmem:[%s4 + $0x30] sm:$0xff]
        %v383 = vld [vmem:[%s4 + $0x38] sm:$0xff]
        %385 = vset.pattern.permute.xlu0 0
        %386 = vperm.xlu0 %385, %v376
        %v387 = vpop.permute.xlu0 %386
        %390 = vset.pattern.permute.xlu0 0
        %391 = vperm.xlu0 %390, %v377
        %v392 = vpop.permute.xlu0 %391
        %395 = vset.pattern.permute.xlu0 0
        %396 = vperm.xlu0 %395, %v378
        %v397 = vpop.permute.xlu0 %396
        %400 = vset.pattern.permute.xlu0 0
        %401 = vperm.xlu0 %400, %v379
        %v402 = vpop.permute.xlu0 %401
        %405 = vset.pattern.permute.xlu0 0
        %406 = vperm.xlu0 %405, %v380
        %v407 = vpop.permute.xlu0 %406
        %410 = vset.pattern.permute.xlu0 0
        %411 = vperm.xlu0 %410, %v381
        %v412 = vpop.permute.xlu0 %411
        %415 = vset.pattern.permute.xlu0 0
        %416 = vperm.xlu0 %415, %v382
        %v417 = vpop.permute.xlu0 %416
        %420 = vset.pattern.permute.xlu0 0
        %421 = vperm.xlu0 %420, %v383
        %v422 = vpop.permute.xlu0 %421
        %v424 = vadd.f32 %v368, %v387
        %v425 = vadd.f32 %v369, %v392
        %v426 = vadd.f32 %v370, %v397
        %v427 = vadd.f32 %v371, %v402
        %v428 = vadd.f32 %v372, %v407
        %v429 = vadd.f32 %v373, %v412
        %v430 = vadd.f32 %v374, %v417
        %v431 = vadd.f32 %v375, %v422
        %v432 = vmul.f32 %v424, %v424
        %v433 = vmul.f32 %v425, %v425
        %v434 = vmul.f32 %v426, %v426
        %v435 = vmul.f32 %v427, %v427
        %v436 = vmul.f32 %v428, %v428
        %v437 = vmul.f32 %v429, %v429
        %v438 = vmul.f32 %v430, %v430
        %v439 = vmul.f32 %v431, %v431
        %v440 = vtanh.pop %v432
        %v441 = vtanh.pop %v433
        %v442 = vtanh.pop %v434
        %v443 = vtanh.pop %v435
        %v444 = vtanh.pop %v436
        %v445 = vtanh.pop %v437
        %v446 = vtanh.pop %v438
        %v447 = vtanh.pop %v439
        %v448 = vsub.f32 1.0, %v440
        %v449 = vsub.f32 1.0, %v441
        %v450 = vsub.f32 1.0, %v442
        %v451 = vsub.f32 1.0, %v443
        %v452 = vsub.f32 1.0, %v444
        %v453 = vsub.f32 1.0, %v445
        %v454 = vsub.f32 1.0, %v446
        %v455 = vsub.f32 1.0, %v447
        %v456 = vld [vmem:[%s5] sm:$0xff]
        %v457 = vld [vmem:[%s5 + $0x8] sm:$0xff]
        %v458 = vld [vmem:[%s5 + $0x10] sm:$0xff]
        %v459 = vld [vmem:[%s5 + $0x18] sm:$0xff]
        %v460 = vld [vmem:[%s5 + $0x20] sm:$0xff]
        %v461 = vld [vmem:[%s5 + $0x28] sm:$0xff]
        %v462 = vld [vmem:[%s5 + $0x30] sm:$0xff]
        %v463 = vld [vmem:[%s5 + $0x38] sm:$0xff]
        %v464 = vld [vmem:[%s6] sm:$0xff]
        %v465 = vld [vmem:[%s6 + $0x8] sm:$0xff]
        %v466 = vld [vmem:[%s6 + $0x10] sm:$0xff]
        %v467 = vld [vmem:[%s6 + $0x18] sm:$0xff]
        %v468 = vld [vmem:[%s6 + $0x20] sm:$0xff]
        %v469 = vld [vmem:[%s6 + $0x28] sm:$0xff]
        %v470 = vld [vmem:[%s6 + $0x30] sm:$0xff]
        %v471 = vld [vmem:[%s6 + $0x38] sm:$0xff]
        %473 = vset.pattern.permute.xlu0 0
        %474 = vperm.xlu0 %473, %v464
        %v475 = vpop.permute.xlu0 %474
        %478 = vset.pattern.permute.xlu0 0
        %479 = vperm.xlu0 %478, %v465
        %v480 = vpop.permute.xlu0 %479
        %483 = vset.pattern.permute.xlu0 0
        %484 = vperm.xlu0 %483, %v466
        %v485 = vpop.permute.xlu0 %484
        %488 = vset.pattern.permute.xlu0 0
        %489 = vperm.xlu0 %488, %v467
        %v490 = vpop.permute.xlu0 %489
        %493 = vset.pattern.permute.xlu0 0
        %494 = vperm.xlu0 %493, %v468
        %v495 = vpop.permute.xlu0 %494
        %498 = vset.pattern.permute.xlu0 0
        %499 = vperm.xlu0 %498, %v469
        %v500 = vpop.permute.xlu0 %499
        %503 = vset.pattern.permute.xlu0 0
        %504 = vperm.xlu0 %503, %v470
        %v505 = vpop.permute.xlu0 %504
        %508 = vset.pattern.permute.xlu0 0
        %509 = vperm.xlu0 %508, %v471
        %v510 = vpop.permute.xlu0 %509
        %vm512 = vcmask 523264
        %v514 = vsel %vm512, %v456, 0
        %v517 = vsel %vm512, %v457, 0
        %v520 = vsel %vm512, %v458, 0
        %v523 = vsel %vm512, %v459, 0
        %v526 = vsel %vm512, %v460, 0
        %v529 = vsel %vm512, %v461, 0
        %v532 = vsel %vm512, %v462, 0
        %v535 = vsel %vm512, %v463, 0
        %537 = vmatprep.subr.mxu0 0.0
        %538 = vmatpush1.msra.mxu0 %v448
        %539 = vmatprep.subr.mxu0 0.0
        %540 = vmatpush1.msra.mxu0 %v449
        %541 = vmatprep.subr.mxu0 0.0
        %542 = vmatpush1.msra.mxu0 %v450
        %543 = vmatprep.subr.mxu0 0.0
        %544 = vmatpush1.msra.mxu0 %v451
        %545 = vmatprep.subr.mxu0 0.0
        %546 = vmatpush1.msra.mxu0 %v452
        %547 = vmatprep.subr.mxu0 0.0
        %548 = vmatpush1.msra.mxu0 %v453
        %549 = vmatprep.subr.mxu0 0.0
        %550 = vmatpush1.msra.mxu0 %v454
        %551 = vmatprep.subr.mxu0 0.0
        %552 = vmatpush1.msra.mxu0 %v455
        %553 = vmatprep.subr.mxu0 0.0
        %554 = vmatpush1.msra.mxu0 0.0
        %555 = vmatprep.subr.mxu0 0.0
        %556 = vmatpush1.msra.mxu0 0.0
        %557 = vmatprep.subr.mxu0 0.0
        %558 = vmatpush1.msra.mxu0 0.0
        %559 = vmatprep.subr.mxu0 0.0
        %560 = vmatpush1.msra.mxu0 0.0
        %561 = vmatprep.subr.mxu0 0.0
        %562 = vmatpush1.msra.mxu0 0.0
        %563 = vmatprep.subr.mxu0 0.0
        %564 = vmatpush1.msra.mxu0 0.0
        %565 = vmatprep.subr.mxu0 0.0
        %566 = vmatpush1.msra.mxu0 0.0
        %567 = vmatprep.subr.mxu0 0.0
        %568 = vmatpush1.msra.mxu0 0.0
        %569 = vmatprep.subr.mxu0 0.0
        %570 = vmatpush1.msra.mxu0 0.0
        %571 = vmatprep.subr.mxu0 0.0
        %572 = vmatpush1.msra.mxu0 0.0
        %573 = vmatprep.subr.mxu0 0.0
        %574 = vmatpush1.msra.mxu0 0.0
        %575 = vmatprep.subr.mxu0 0.0
        %576 = vmatpush1.msra.mxu0 0.0
        %577 = vmatprep.subr.mxu0 0.0
        %578 = vmatpush1.msra.mxu0 0.0
        %579 = vmatprep.subr.mxu0 0.0
        %580 = vmatpush1.msra.mxu0 0.0
        %581 = vmatprep.subr.mxu0 0.0
        %582 = vmatpush1.msra.mxu0 0.0
        %583 = vmatprep.subr.mxu0 0.0
        %584 = vmatpush1.msra.mxu0 0.0
        %585 = vmatprep.subr.mxu0 0.0
        %586 = vmatpush1.msra.mxu0 0.0
        %587 = vmatprep.subr.mxu0 0.0
        %588 = vmatpush1.msra.mxu0 0.0
        %589 = vmatprep.subr.mxu0 0.0
        %590 = vmatpush1.msra.mxu0 0.0
        %591 = vmatprep.subr.mxu0 0.0
        %592 = vmatpush1.msra.mxu0 0.0
        %593 = vmatprep.subr.mxu0 0.0
        %594 = vmatpush1.msra.mxu0 0.0
        %595 = vmatprep.subr.mxu0 0.0
        %596 = vmatpush1.msra.mxu0 0.0
        %597 = vmatprep.subr.mxu0 0.0
        %598 = vmatpush1.msra.mxu0 0.0
        %599 = vmatprep.subr.mxu0 0.0
        %600 = vmatpush1.msra.mxu0 0.0
        %601 = vmatprep.mubr.f32.mxu0 0.0
        %602 = vmatmul.mubr.f32.gmra.mrb[0].mxu0 %v514
        %v603 = vpop.f32.mrb[0].mxu0
        %v604 = vadd.f32 %v475, %v603
        %v605 = vpop.f32.mrb[0].mxu0
        %606 = vmatprep.mubr.f32.mxu0 0.0
        %607 = vmatmul.mubr.f32.gmra.mrb[0].mxu0 %v517
        %v608 = vpop.f32.mrb[0].mxu0
        %v609 = vadd.f32 %v480, %v608
        %v610 = vpop.f32.mrb[0].mxu0
        %611 = vmatprep.mubr.f32.mxu0 0.0
        %612 = vmatmul.mubr.f32.gmra.mrb[0].mxu0 %v520
        %v613 = vpop.f32.mrb[0].mxu0
        %v614 = vadd.f32 %v485, %v613
        %v615 = vpop.f32.mrb[0].mxu0
        %616 = vmatprep.mubr.f32.mxu0 0.0
        %617 = vmatmul.mubr.f32.gmra.mrb[0].mxu0 %v523
        %v618 = vpop.f32.mrb[0].mxu0
        %v619 = vadd.f32 %v490, %v618
        %v620 = vpop.f32.mrb[0].mxu0
        %621 = vmatprep.mubr.f32.mxu0 0.0
        %622 = vmatmul.mubr.f32.gmra.mrb[0].mxu0 %v526
        %v623 = vpop.f32.mrb[0].mxu0
        %v624 = vadd.f32 %v495, %v623
        %v625 = vpop.f32.mrb[0].mxu0
        %626 = vmatprep.mubr.f32.mxu0 0.0
        %627 = vmatmul.mubr.f32.gmra.mrb[0].mxu0 %v529
        %v628 = vpop.f32.mrb[0].mxu0
        %v629 = vadd.f32 %v500, %v628
        %v630 = vpop.f32.mrb[0].mxu0
        %631 = vmatprep.mubr.f32.mxu0 0.0
        %632 = vmatmul.mubr.f32.gmra.mrb[0].mxu0 %v532
        %v633 = vpop.f32.mrb[0].mxu0
        %v634 = vadd.f32 %v505, %v633
        %v635 = vpop.f32.mrb[0].mxu0
        %636 = vmatprep.mubr.f32.mxu0 0.0
        %637 = vmatmul.mubr.f32.gmra.mrb[0].mxu0 %v535
        %v638 = vpop.f32.mrb[0].mxu0
        %v639 = vadd.f32 %v510, %v638
        %v640 = vpop.f32.mrb[0].mxu0
        %641 = vdwg.mxu0
        %v642 = vmax.f32 %v604, 0.0
        %v643 = vmax.f32 %v609, 0.0
        %v644 = vmax.f32 %v614, 0.0
        %v645 = vmax.f32 %v619, 0.0
        %v646 = vmax.f32 %v624, 0.0
        %v647 = vmax.f32 %v629, 0.0
        %v648 = vmax.f32 %v634, 0.0
        %v649 = vmax.f32 %v639, 0.0
        %v650 = vmul.f32 %v642, %v305
        %v651 = vmul.f32 %v643, %v306
        %v652 = vmul.f32 %v644, %v307
        %v653 = vmul.f32 %v645, %v308
        %v654 = vmul.f32 %v646, %v309
        %v655 = vmul.f32 %v647, %v310
        %v656 = vmul.f32 %v648, %v311
        %v657 = vmul.f32 %v649, %v312
        %vm658 = vcmask 64512
        %v659 = vsel %vm658, %v650, 0.0
        %v660 = vsel %vm658, %v651, 0.0
        %v661 = vadd.f32 %v659, %v660
        %v662 = vsel %vm658, %v652, 0.0
        %v663 = vadd.f32 %v661, %v662
        %v664 = vsel %vm658, %v653, 0.0
        %v665 = vadd.f32 %v663, %v664
        %v666 = vsel %vm658, %v654, 0.0
        %v667 = vadd.f32 %v665, %v666
        %v668 = vsel %vm658, %v655, 0.0
        %v669 = vadd.f32 %v667, %v668
        %v670 = vsel %vm658, %v656, 0.0
        %v671 = vadd.f32 %v669, %v670
        %v672 = vsel %vm658, %v657, 0.0
        %v673 = vadd.f32 %v671, %v672
        %v674 = vrot.slane %v673, 4
        %v675 = vadd.f32 %v673, %v674
        %v676 = vrot.slane %v675, 2
        %v677 = vadd.f32 %v675, %v676
        %v678 = vrot.slane %v677, 1
        %v679 = vadd.f32 %v677, %v678
        %v680 = vmul.f32 %v679, 0.125
        %vm681 = vcmp.ne.s32.totalorder %v313, 0
        %v682 = vsel %vm681, -inf, %v680
        %vm683 = vcmask 57344
        %v684 = vsel %vm683, %v682, -inf
        %685 = vmax.xlane.f32.xlu0 %v684
        %v686 = vpop.xlane.xlu0 %685
        %v687 = vsub.f32 %v682, %v686
        %v688 = vmul.f32 %v687, 1.442695
        %v689 = vpow.pop %v688
        %v690 = vsel %vm683, %v689, 0.0
        %691 = vadd.xlane.f32.xlu0 %v690
        %v692 = vpop.xlane.xlu0 %691
        %v693 = vrcp.pop %v692
        %v694 = vmul.f32 %v689, %v693
        %695 = vst.msk [vmem:[%s292] sm:$0x1] %vm683, %v694
        %s696 = sand.u32 %s191, 1
        %s697 = scalar_lea.sflag [#allocation3], %s696
        %s698 = sand.u32 %s191, 1
        %s699 = scalar_lea.vmem [#allocation2], %s698
        // Predicated region
        $region49: #{tpu_custom_call.1} parent=47 // pred_check
          %p700 = pneg %p201
        $region50: #{tpu_custom_call.1} parent=47 // pred_check_branch
          %702 = sbr.rel (%p700) target = $region52
        $region51: #{tpu_custom_call.1} parent=47 // pred_region
          %s704 = ssub.s32 16, 16
          %705 = vsyncadd %s697, %s704
          %s706 = smul.addr %s21, 16
          %s707 = scalar_lea.hbm %s7, %s706
          %s709 = sshll.u32 %s699, 4
          %s710 = int_to_ptr.vmem [resolvable:$true] %s709
          %712 = dma.vmem_to_hbm [thread:$0]  %s710, 16, %s707, %s697
        $region52: #{tpu_custom_call.1} parent=47 // pred_fallthru
          _
      $region48: #{tpu_custom_call.1} parent=5 // pred_fallthru
        _
      %p713 = scmp.le.s32.totalorder 2, %s16
      // Predicated region
      $region53: #{tpu_custom_call.1} parent=5 // pred_check
        %p714 = pneg %p713
      $region54: #{tpu_custom_call.1} parent=5 // pred_check_branch
        %716 = sbr.rel (%p714) target = $region56
      $region55: #{tpu_custom_call.1} parent=5 // pred_region
        %s717 = ssub.s32 %s16, 2
        // Predicated region
        $region57: #{tpu_custom_call.1} parent=55 // pred_check
          %p718 = pneg %p207
        $region58: #{tpu_custom_call.1} parent=55 // pred_check_branch
          %720 = sbr.rel (%p718) target = $region60
        $region59: #{tpu_custom_call.1} parent=55 // pred_region
          %s721 = sand.u32 %s192, 1
          %s722 = scalar_lea.sflag [#allocation3], %s721
          %s723 = sand.u32 %s192, 1
          %s724 = scalar_lea.vmem [#allocation2], %s723
          %725 = dma.done %s722, 16
        $region60: #{tpu_custom_call.1} parent=55 // pred_fallthru
          _
      $region56: #{tpu_custom_call.1} parent=5 // pred_fallthru
        _
    $region6: #{tpu_custom_call.1} parent=1 // loop_footer
      %s20 = sadd.s32 1, %s16
    $region7: #{tpu_custom_call.1} parent=1 // loop_footer_branch
      %15 = sbr.rel target = $region3
    $region8: #{tpu_custom_call.1} parent=1 // loop_exit
      _
    %726 = vsyncpa [#allocation3], 1
    %s727 = scalar_lea.sflag [#allocation3], 1
    %728 = vsyncpa %s727, 1

</llo_original>
